<compile_context>
chip_gen: v5e
topology: v5e:2x2
jax: 0.10.0
libtpu: 0.0.40
codegen_flags: <defaults>
</compile_context>

<pallas_src>
import functools

import jax
import jax.numpy as jnp
from jax.experimental import pallas as pl
from jax.experimental.pallas import tpu as pltpu


# --------------------------------------------------------------------------
# Preamble kernel: project K and V once per (batch, head) -> (B, H, Lk, Dh).
# --------------------------------------------------------------------------
def _kv_proj_kernel(k_ref, v_ref, wk_ref, bk_ref, wv_ref, bv_ref,
                    ko_ref, vo_ref):
    k_in = k_ref[0]                                   # (Lk, D)
    v_in = v_ref[0]                                   # (Lk, D)
    kp = jnp.dot(k_in, wk_ref[0], preferred_element_type=jnp.float32) + bk_ref[0]
    vp = jnp.dot(v_in, wv_ref[0], preferred_element_type=jnp.float32) + bv_ref[0]
    ko_ref[0, 0] = kp.astype(ko_ref.dtype)            # stored in compute dtype
    vo_ref[0, 0] = vp.astype(vo_ref.dtype)


# --------------------------------------------------------------------------
# Main kernel: per-(batch, q-tile) attention over pre-projected K/V.
# --------------------------------------------------------------------------
def _mhca_kernel(*refs, num_heads, has_mask):
    if has_mask:
        (q_ref, k_ref, v_ref, wq_ref, bq_ref, wo_ref, bo_ref, mask_ref,
         o_ref, acc_ref) = refs
    else:
        (q_ref, k_ref, v_ref, wq_ref, bq_ref, wo_ref, bo_ref,
         o_ref, acc_ref) = refs
        mask_ref = None

    q_in = q_ref[0]                                   # (Tq, D)
    mm_dtype = q_in.dtype
    contract_last = (((1,), (1,)), ((), ()))          # A @ B^T w/o materializing B^T

    acc_ref[...] = jnp.zeros_like(acc_ref)

    # fori_loop (not Python-unrolled) bounds the live working set to one head's
    # (Tq, Lk) f32 scores/probs at a time -> predictable VMEM on v7x.
    def head_body(h, carry):
        # Q projection for this head; 1/sqrt(Dh) already folded into wq/bq.
        qh = (jnp.dot(q_in, wq_ref[h], preferred_element_type=jnp.float32)
              + bq_ref[h]).astype(mm_dtype)           # (Tq, Dh), single cast
        kh = k_ref[0, h]                              # (Lk, Dh), already mm_dtype
        vh = v_ref[0, h]                              # (Lk, Dh)

        scores = jax.lax.dot_general(
            qh, kh, contract_last,
            preferred_element_type=jnp.float32)       # (Tq, Lk) f32

        if has_mask:
            scores = jnp.where(mask_ref[0] == 0, -jnp.inf, scores)

        # Numerically-stable softmax over keys, kept in f32; exact reciprocal
        # (off the MXU critical path) for closer fidelity to the reference.
        scores = scores - jnp.max(scores, axis=-1, keepdims=True)
        probs = jnp.exp(scores)
        probs = probs * pl.reciprocal(jnp.sum(probs, axis=-1, keepdims=True),
                                      approx=False)

        ctx = jnp.dot(probs.astype(mm_dtype), vh,
                      preferred_element_type=jnp.float32)   # (Tq, Dh)

        # Accumulate this head's output-projection partial in f32 VMEM.
        # TODO(synk): when head_dim % 128 == 0, write ctx into lane-aligned
        # slices of a (Tq, D) scratch and do a single D-wide out-projection.
        acc_ref[...] += jnp.dot(ctx.astype(mm_dtype), wo_ref[h],
                                preferred_element_type=jnp.float32)
        return carry

    jax.lax.fori_loop(0, num_heads, head_body, 0)
    o_ref[0] = (acc_ref[...] + bo_ref[...]).astype(o_ref.dtype)


# --------------------------------------------------------------------------
# Wrapper helpers.
# --------------------------------------------------------------------------
def _vmem_limit_bytes():
    cap = 128 * 1024 * 1024
    try:
        cap = int(pltpu.get_tpu_info().vmem_capacity_bytes)
    except Exception:                 # info query unavailable -> safe default
        pass
    # Leave ~15% headroom for compiler internal scratch (v6e ~108 MiB, v7x ~54 MiB).
    return int(cap * 0.85)


def _pick_tile_q(lq, max_tile=512):
    """Largest MXU/sublane-friendly q tile dividing Lq (prefers 256/128-aligned)."""
    if lq <= max_tile:
        return lq
    for step in (256, 128, 16, 8):
        t = (max_tile // step) * step
        while t >= step:
            if lq % t == 0:
                return t
            t -= step
    return lq


def _spec(shape, index_map, buffers=None):
    """BlockSpec, optionally with an explicit pipeline buffer count."""
    if buffers is None:
        return pl.BlockSpec(shape, index_map)
    try:
        return pl.BlockSpec(shape, index_map, pipeline_mode=pl.Buffered(buffers))
    except TypeError:                 # jax without pipeline_mode: default buffering
        return pl.BlockSpec(shape, index_map)


# --------------------------------------------------------------------------
# Public entry point.
# --------------------------------------------------------------------------
def multi_head_cross_attention(query, key, value, params, *, num_heads,
                               mask=None, tile_q=None, compute_dtype=None):
    """query: (B, Lq, D); key/value: (B, Lk, D); mask: optional (B, Lk).
    Returns (B, Lq, D)."""
    B, Lq, D = query.shape
    _, Lk, _ = key.shape
    assert D % num_heads == 0
    head_dim = D // num_heads
    out_dtype = query.dtype
    if compute_dtype is None:
        # bf16 MXU inputs with f32 accumulation by default (all generations).
        compute_dtype = jnp.bfloat16 if query.dtype == jnp.float32 else query.dtype
    itemsize = jnp.dtype(compute_dtype).itemsize

    scale = 1.0 / (head_dim ** 0.5)
    vmem_limit = _vmem_limit_bytes()

    # --- weight prep (trace time, free): PyTorch [D_out, D_in] -> per head ---
    def split_in_proj(w, b, fold_scale=False):
        w_r = w.T.reshape(D, num_heads, head_dim).transpose(1, 0, 2)  # (H, D, Dh)
        b_r = b.reshape(num_heads, 1, head_dim)                       # (H, 1, Dh)
        if fold_scale:
            w_r = w_r * scale
            b_r = b_r * scale
        return w_r.astype(compute_dtype), b_r.astype(jnp.float32)

    wq_r, bq_r = split_in_proj(params["wq"], params["bq"], fold_scale=True)
    wk_r, bk_r = split_in_proj(params["wk"], params["bk"])
    wv_r, bv_r = split_in_proj(params["wv"], params["bv"])
    wo_r = params["wo"].T.reshape(num_heads, head_dim, D).astype(compute_dtype)
    bo_r = params["bo"].reshape(1, D).astype(jnp.float32)

    q_in = query.astype(compute_dtype)
    k_in = key.astype(compute_dtype)
    v_in = value.astype(compute_dtype)

    # --- preamble: K/V projected once per batch element (no per-q-tile redo) --
    k_proj, v_proj = pl.pallas_call(
        _kv_proj_kernel,
        out_shape=(
            jax.ShapeDtypeStruct((B, num_heads, Lk, head_dim), compute_dtype),
            jax.ShapeDtypeStruct((B, num_heads, Lk, head_dim), compute_dtype),
        ),
        grid_spec=pltpu.PrefetchScalarGridSpec(
            num_scalar_prefetch=0,
            grid=(B, num_heads),
            in_specs=[
                pl.BlockSpec((1, Lk, D), lambda b, h: (b, 0, 0)),
                pl.BlockSpec((1, Lk, D), lambda b, h: (b, 0, 0)),
                pl.BlockSpec((1, D, head_dim), lambda b, h: (h, 0, 0)),
                pl.BlockSpec((1, 1, head_dim), lambda b, h: (h, 0, 0)),
                pl.BlockSpec((1, D, head_dim), lambda b, h: (h, 0, 0)),
                pl.BlockSpec((1, 1, head_dim), lambda b, h: (h, 0, 0)),
            ],
            out_specs=[
                pl.BlockSpec((1, 1, Lk, head_dim), lambda b, h: (b, h, 0, 0)),
                pl.BlockSpec((1, 1, Lk, head_dim), lambda b, h: (b, h, 0, 0)),
            ],
        ),
        compiler_params=pltpu.CompilerParams(
            dimension_semantics=("parallel", "parallel"),
            vmem_limit_bytes=vmem_limit,
        ),
    )(k_in, v_in, wk_r, bk_r, wv_r, bv_r)

    # --- main attention kernel ------------------------------------------------
    if tile_q is None:
        tile_q = _pick_tile_q(Lq)
    assert Lq % tile_q == 0, "Lq must be divisible by tile_q"
    n_q = Lq // tile_q

    # Projected K/V are resident per batch element; drop to single buffering
    # when double-buffering them would crowd VMEM (matters on v7x's 64 MiB).
    kv_block_bytes = num_heads * Lk * head_dim * itemsize
    kv_buffers = None if (4 * kv_block_bytes) <= vmem_limit // 3 else 1

    q_spec = pl.BlockSpec((1, tile_q, D), lambda b, qi: (b, qi, 0))
    kv_spec = _spec((1, num_heads, Lk, head_dim), lambda b, qi: (b, 0, 0, 0),
                    buffers=kv_buffers)
    # Grid-invariant weights/biases: single-buffer (no pipelining benefit).
    wq_spec = _spec((num_heads, D, head_dim), lambda b, qi: (0, 0, 0), buffers=1)
    bq_spec = _spec((num_heads, 1, head_dim), lambda b, qi: (0, 0, 0), buffers=1)
    wo_spec = _spec((num_heads, head_dim, D), lambda b, qi: (0, 0, 0), buffers=1)
    bo_spec = _spec((1, D), lambda b, qi: (0, 0), buffers=1)
    out_spec = pl.BlockSpec((1, tile_q, D), lambda b, qi: (b, qi, 0))

    in_specs = [q_spec, kv_spec, kv_spec, wq_spec, bq_spec, wo_spec, bo_spec]
    inputs = [q_in, k_proj, v_proj, wq_r, bq_r, wo_r, bo_r]
    has_mask = mask is not None
    if has_mask:
        mask_in = mask.reshape(B, 1, Lk).astype(jnp.float32)
        in_specs.append(pl.BlockSpec((1, 1, Lk), lambda b, qi: (b, 0, 0)))
        inputs.append(mask_in)

    kernel = functools.partial(_mhca_kernel, num_heads=num_heads,
                               has_mask=has_mask)

    return pl.pallas_call(
        kernel,
        out_shape=jax.ShapeDtypeStruct((B, Lq, D), out_dtype),
        grid_spec=pltpu.PrefetchScalarGridSpec(
            num_scalar_prefetch=0,
            grid=(B, n_q),
            in_specs=in_specs,
            out_specs=out_spec,
            scratch_shapes=[pltpu.VMEM((tile_q, D), jnp.float32)],
        ),
        compiler_params=pltpu.CompilerParams(
            dimension_semantics=("parallel", "parallel"),
            vmem_limit_bytes=vmem_limit,
        ),
    )(*inputs)


# --------------------------------------------------------------------------
# Plain-JAX reference (mirrors the PyTorch forward, including mask semantics).
# --------------------------------------------------------------------------
def _reference(query, key, value, params, *, num_heads, mask=None):
    B, Lq, D = query.shape
    Dh = D // num_heads

    def lin(x, w, b):
        return jnp.einsum("bld,od->blo", x, w) + b

    q = lin(query, params["wq"], params["bq"]).reshape(B, Lq, num_heads, Dh).transpose(0, 2, 1, 3)
    k = lin(key, params["wk"], params["bk"]).reshape(B, -1, num_heads, Dh).transpose(0, 2, 1, 3)
    v = lin(value, params["wv"], params["bv"]).reshape(B, -1, num_heads, Dh).transpose(0, 2, 1, 3)

    scores = jnp.einsum("bhqd,bhkd->bhqk", q, k) / (Dh ** 0.5)
    if mask is not None:
        scores = jnp.where(mask[:, None, None, :] == 0, -jnp.inf, scores)
    attn = jax.nn.softmax(scores, axis=-1)
    out = jnp.einsum("bhqk,bhkd->bhqd", attn, v)
    out = out.transpose(0, 2, 1, 3).reshape(B, Lq, D)
    return lin(out, params["wo"], params["bo"])


def _init_params(key, input_dim):
    """Deterministic init mimicking nn.Linear default uniform(-1/sqrt(D), 1/sqrt(D))."""
    bound = 1.0 / (input_dim ** 0.5)
    names = ["wq", "bq", "wk", "bk", "wv", "bv", "wo", "bo"]
    keys = jax.random.split(key, len(names))
    params = {}
    for name, k in zip(names, keys):
        shape = (input_dim, input_dim) if name.startswith("w") else (input_dim,)
        params[name] = jax.random.uniform(
            k, shape, dtype=jnp.float32, minval=-bound, maxval=bound)
    return params


if __name__ == "__main__":
    B, Lq, Lk, D, H = 2, 8, 8, 32, 4

    root = jax.random.PRNGKey(0)
    kq, kk, kv, kp, km = jax.random.split(root, 5)
    query = jax.random.normal(kq, (B, Lq, D), dtype=jnp.float32)
    key_in = jax.random.normal(kk, (B, Lk, D), dtype=jnp.float32)
    value = jax.random.normal(kv, (B, Lk, D), dtype=jnp.float32)
    params = _init_params(kp, D)
    mask = (jax.random.uniform(km, (B, Lk)) > 0.3).astype(jnp.float32)
    mask = mask.at[:, 0].set(1.0)     # keep >=1 valid key per row (like PyTorch use)

    # 1) f32 compute path (closest to the PyTorch reference numerics).
    out_f32 = jax.block_until_ready(
        multi_head_cross_attention(query, key_in, value, params, num_heads=H,
                                   compute_dtype=jnp.float32))
    ref = _reference(query, key_in, value, params, num_heads=H)
    assert out_f32.shape == (B, Lq, D)
    assert jnp.allclose(out_f32, ref, atol=1e-4, rtol=1e-3), "f32 mismatch vs reference"

    # 2) default path: bf16 MXU inputs, f32 accumulation / f32 softmax.
    out_bf16 = jax.block_until_ready(
        multi_head_cross_attention(query, key_in, value, params, num_heads=H))
    assert jnp.allclose(out_bf16, ref, atol=5e-2, rtol=5e-2), "bf16 mismatch vs reference"

    # 3) masked path (f32 compute).
    out_mask = jax.block_until_ready(
        multi_head_cross_attention(query, key_in, value, params, num_heads=H,
                                   mask=mask, compute_dtype=jnp.float32))
    ref_mask = _reference(query, key_in, value, params, num_heads=H, mask=mask)
    assert jnp.allclose(out_mask, ref_mask, atol=1e-4, rtol=1e-3), "masked mismatch vs reference"

    print("KERNEL_OK")
</pallas_src>

<mosaic_0001>
module attributes {stable_mosaic.version = 11 : i64} {
  func.func @_kv_proj_kernel(%arg0: i32, %arg1: i32, %arg2: memref<1x8x32xf32, #tpu.memory_space<vmem>>, %arg3: memref<1x8x32xf32, #tpu.memory_space<vmem>>, %arg4: memref<1x32x8xf32, #tpu.memory_space<vmem>>, %arg5: memref<1x1x8xf32, #tpu.memory_space<vmem>>, %arg6: memref<1x32x8xf32, #tpu.memory_space<vmem>>, %arg7: memref<1x1x8xf32, #tpu.memory_space<vmem>>, %arg8: memref<1x1x8x8xf32, #tpu.memory_space<vmem>>, %arg9: memref<1x1x8x8xf32, #tpu.memory_space<vmem>>) attributes {dimension_semantics = [#tpu.dimension_semantics<parallel>, #tpu.dimension_semantics<parallel>], iteration_bounds = array<i64: 2, 4>, scalar_prefetch = 0 : i64, scratch_operands = 0 : i64, tpu.core_type = #tpu.core_type<tc>, window_params = [{transform_indices = @transform_0, window_bounds = array<i64: 1, 8, 32>}, {transform_indices = @transform_1, window_bounds = array<i64: 1, 8, 32>}, {transform_indices = @transform_2, window_bounds = array<i64: 1, 32, 8>}, {transform_indices = @transform_3, window_bounds = array<i64: 1, 1, 8>}, {transform_indices = @transform_4, window_bounds = array<i64: 1, 32, 8>}, {transform_indices = @transform_5, window_bounds = array<i64: 1, 1, 8>}, {transform_indices = @transform_6, window_bounds = array<i64: 1, 1, 8, 8>}, {transform_indices = @transform_7, window_bounds = array<i64: 1, 1, 8, 8>}]} {
    %c0 = arith.constant 0 : index
    %c0_0 = arith.constant 0 : index
    %c0_1 = arith.constant 0 : index
    %0 = vector.load %arg2[%c0, %c0_0, %c0_1] : memref<1x8x32xf32, #tpu.memory_space<vmem>>, vector<1x8x32xf32>
    %1 = vector.shape_cast %0 : vector<1x8x32xf32> to vector<8x32xf32>
    %c0_2 = arith.constant 0 : index
    %c0_3 = arith.constant 0 : index
    %c0_4 = arith.constant 0 : index
    %2 = vector.load %arg3[%c0_2, %c0_3, %c0_4] : memref<1x8x32xf32, #tpu.memory_space<vmem>>, vector<1x8x32xf32>
    %3 = vector.shape_cast %2 : vector<1x8x32xf32> to vector<8x32xf32>
    %c0_5 = arith.constant 0 : index
    %c0_6 = arith.constant 0 : index
    %c0_7 = arith.constant 0 : index
    %4 = vector.load %arg4[%c0_5, %c0_6, %c0_7] : memref<1x32x8xf32, #tpu.memory_space<vmem>>, vector<1x32x8xf32>
    %5 = vector.shape_cast %4 : vector<1x32x8xf32> to vector<32x8xf32>
    %cst = arith.constant dense<0.000000e+00> : vector<8x8xf32>
    %6 = tpu.matmul %1, %5, %cst {dimension_numbers = #tpu.dot_dimension_numbers<[1], [0], [0], [1], [0, 0, 1, 1], [], []>} : vector<8x32xf32>, vector<32x8xf32>, vector<8x8xf32> -> vector<8x8xf32>
    %c0_8 = arith.constant 0 : index
    %c0_9 = arith.constant 0 : index
    %c0_10 = arith.constant 0 : index
    %7 = vector.load %arg5[%c0_8, %c0_9, %c0_10] : memref<1x1x8xf32, #tpu.memory_space<vmem>>, vector<1x1x8xf32>
    %8 = vector.shape_cast %7 : vector<1x1x8xf32> to vector<1x8xf32>
    %9 = vector.broadcast %8 : vector<1x8xf32> to vector<8x8xf32>
    %10 = arith.addf %6, %9 : vector<8x8xf32>
    %c0_11 = arith.constant 0 : index
    %c0_12 = arith.constant 0 : index
    %c0_13 = arith.constant 0 : index
    %11 = vector.load %arg6[%c0_11, %c0_12, %c0_13] : memref<1x32x8xf32, #tpu.memory_space<vmem>>, vector<1x32x8xf32>
    %12 = vector.shape_cast %11 : vector<1x32x8xf32> to vector<32x8xf32>
    %cst_14 = arith.constant dense<0.000000e+00> : vector<8x8xf32>
    %13 = tpu.matmul %3, %12, %cst_14 {dimension_numbers = #tpu.dot_dimension_numbers<[1], [0], [0], [1], [0, 0, 1, 1], [], []>} : vector<8x32xf32>, vector<32x8xf32>, vector<8x8xf32> -> vector<8x8xf32>
    %c0_15 = arith.constant 0 : index
    %c0_16 = arith.constant 0 : index
    %c0_17 = arith.constant 0 : index
    %14 = vector.load %arg7[%c0_15, %c0_16, %c0_17] : memref<1x1x8xf32, #tpu.memory_space<vmem>>, vector<1x1x8xf32>
    %15 = vector.shape_cast %14 : vector<1x1x8xf32> to vector<1x8xf32>
    %16 = vector.broadcast %15 : vector<1x8xf32> to vector<8x8xf32>
    %17 = arith.addf %13, %16 : vector<8x8xf32>
    %c0_18 = arith.constant 0 : index
    %c0_19 = arith.constant 0 : index
    %c0_20 = arith.constant 0 : index
    %c0_21 = arith.constant 0 : index
    %18 = vector.load %arg8[%c0_18, %c0_19, %c0_20, %c0_21] : memref<1x1x8x8xf32, #tpu.memory_space<vmem>>, vector<1x1x8x8xf32>
    %19 = vector.shape_cast %18 : vector<1x1x8x8xf32> to vector<8x8xf32>
    %20 = vector.shape_cast %10 : vector<8x8xf32> to vector<1x1x8x8xf32>
    tpu.vector_store %arg8[%c0_18, %c0_19, %c0_20, %c0_21], %20 {strides = array<i32>} : memref<1x1x8x8xf32, #tpu.memory_space<vmem>>, vector<1x1x8x8xf32>,
    %c0_22 = arith.constant 0 : index
    %c0_23 = arith.constant 0 : index
    %c0_24 = arith.constant 0 : index
    %c0_25 = arith.constant 0 : index
    %21 = vector.load %arg9[%c0_22, %c0_23, %c0_24, %c0_25] : memref<1x1x8x8xf32, #tpu.memory_space<vmem>>, vector<1x1x8x8xf32>
    %22 = vector.shape_cast %21 : vector<1x1x8x8xf32> to vector<8x8xf32>
    %23 = vector.shape_cast %17 : vector<8x8xf32> to vector<1x1x8x8xf32>
    tpu.vector_store %arg9[%c0_22, %c0_23, %c0_24, %c0_25], %23 {strides = array<i32>} : memref<1x1x8x8xf32, #tpu.memory_space<vmem>>, vector<1x1x8x8xf32>,
    return
  }
  func.func @transform_0(%arg0: i32, %arg1: i32) -> (i32, i32, i32) {
    %c0_i32 = arith.constant 0 : i32
    %c0_i32_0 = arith.constant 0 : i32
    %c0_i32_1 = arith.constant 0 : i32
    return %arg0, %c0_i32, %c0_i32_0 : i32, i32, i32
  }
  func.func @transform_1(%arg0: i32, %arg1: i32) -> (i32, i32, i32) {
    %c0_i32 = arith.constant 0 : i32
    %c0_i32_0 = arith.constant 0 : i32
    %c0_i32_1 = arith.constant 0 : i32
    return %arg0, %c0_i32, %c0_i32_0 : i32, i32, i32
  }
  func.func @transform_2(%arg0: i32, %arg1: i32) -> (i32, i32, i32) {
    %c0_i32 = arith.constant 0 : i32
    %c0_i32_0 = arith.constant 0 : i32
    %c0_i32_1 = arith.constant 0 : i32
    return %arg1, %c0_i32, %c0_i32_0 : i32, i32, i32
  }
  func.func @transform_3(%arg0: i32, %arg1: i32) -> (i32, i32, i32) {
    %c0_i32 = arith.constant 0 : i32
    %c0_i32_0 = arith.constant 0 : i32
    %c0_i32_1 = arith.constant 0 : i32
    return %arg1, %c0_i32, %c0_i32_0 : i32, i32, i32
  }
  func.func @transform_4(%arg0: i32, %arg1: i32) -> (i32, i32, i32) {
    %c0_i32 = arith.constant 0 : i32
    %c0_i32_0 = arith.constant 0 : i32
    %c0_i32_1 = arith.constant 0 : i32
    return %arg1, %c0_i32, %c0_i32_0 : i32, i32, i32
  }
  func.func @transform_5(%arg0: i32, %arg1: i32) -> (i32, i32, i32) {
    %c0_i32 = arith.constant 0 : i32
    %c0_i32_0 = arith.constant 0 : i32
    %c0_i32_1 = arith.constant 0 : i32
    return %arg1, %c0_i32, %c0_i32_0 : i32, i32, i32
  }
  func.func @transform_6(%arg0: i32, %arg1: i32) -> (i32, i32, i32, i32) {
    %c0_i32 = arith.constant 0 : i32
    %c0_i32_0 = arith.constant 0 : i32
    %c0_i32_1 = arith.constant 0 : i32
    return %arg0, %arg1, %c0_i32, %c0_i32_0 : i32, i32, i32, i32
  }
  func.func @transform_7(%arg0: i32, %arg1: i32) -> (i32, i32, i32, i32) {
    %c0_i32 = arith.constant 0 : i32
    %c0_i32_0 = arith.constant 0 : i32
    %c0_i32_1 = arith.constant 0 : i32
    return %arg0, %arg1, %c0_i32, %c0_i32_0 : i32, i32, i32, i32
  }
}

</mosaic_0001>

<llo_original>
// kernel: tpu_custom_call.1
$region0: #{tpu_custom_call.1}
  #allocation0 [shape = 'u32[]', space=smem, size = 0x4, offset = 0x4, fixed_abs, tag = 'smem constant byte address 0x4 - core index']
  #allocation1 [shape = 'u32[72,128]{1,0:T(1,128)}', space=vmem, size = 0x9000, scoped, tag = 'internal scratch']
  %s0 = inlined_call_operand.vmem [shape: f32[2,8,32], index: 0, kind: input, shape index: {}]
  %s1 = inlined_call_operand.vmem [shape: f32[2,8,32], index: 1, kind: input, shape index: {}]
  %s2 = inlined_call_operand.vmem [shape: f32[4,32,8], index: 2, kind: input, shape index: {}]
  %s3 = inlined_call_operand.vmem [shape: f32[4,1,8], index: 3, kind: input, shape index: {}]
  %s4 = inlined_call_operand.vmem [shape: f32[4,32,8], index: 4, kind: input, shape index: {}]
  %s5 = inlined_call_operand.vmem [shape: f32[4,1,8], index: 5, kind: input, shape index: {}]
  %s6 = inlined_call_operand.hbm [shape: f32[2,4,8,8], index: 6, kind: output, shape index: {0}]
  %s7 = inlined_call_operand.hbm [shape: f32[2,4,8,8], index: 7, kind: output, shape index: {1}]
  %8 = xla_tuple %s6, %s7
  %s9 = sld [smem:[#allocation0]]
  $region65: #{tpu_custom_call.1} parent=0
    _
  %s11 = ssub.s32 1, %s9
  %s12 = scalar_select 0, %s11, %s9
  $region1: #{tpu_custom_call.1} parent=0
    #allocation2 [shape = 'u8[8192]{0}', space=vmem, size = 0x2000, scoped, tag = 'output window, operand 0']
    #allocation3 [shape = 's32[2]{0}', space=sflag, size = 0x8, scoped, tag = 'scoped memory for tpu_custom_call.1']
    #allocation4 [shape = 'u8[8192]{0}', space=vmem, size = 0x2000, scoped, tag = 'output window, operand 1']
    #allocation5 [shape = 's32[2]{0}', space=sflag, size = 0x8, scoped, tag = 'scoped memory for tpu_custom_call.1']
    %13 = vsyncpa [#allocation3], 0
    %s14 = scalar_lea.sflag [#allocation3], 1
    %15 = vsyncpa %s14, 0
    %16 = vsyncpa [#allocation5], 0
    %s17 = scalar_lea.sflag [#allocation5], 1
    %18 = vsyncpa %s17, 0
    loop: start=0, step=1, limit=10
    $region2: #{tpu_custom_call.1} parent=1 // loop_pre_header
      _
    $region3: #{tpu_custom_call.1} parent=1 // loop_header
      %s20 = sphi 0, %s24
      %p21 = scmp.ge.s32.totalorder %s20, 10
      %s27 = sphi 0, %s39
      %s28 = sphi 0, %s35
      %s29 = sphi 0, %s27
      %s30 = sphi 0, %s28
      %s31 = sphi 0, %s29
      %s32 = sphi 0, %s30
      %s42 = sphi 0, %s44
      %s45 = sphi 0, %s42
      %s46 = sphi 0, %s45
      %s62 = sphi 0, %s46
      %s68 = sphi 0, %s70
      %s71 = sphi 0, %s68
      %s72 = sphi 0, %s71
      %s88 = sphi 0, %s72
      %s94 = sphi 0, %s96
      %s97 = sphi 0, %s94
      %s98 = sphi 0, %s97
      %s114 = sphi 0, %s98
      %s120 = sphi 0, %s122
      %s123 = sphi 0, %s120
      %s124 = sphi 0, %s123
      %s140 = sphi 0, %s124
      %s146 = sphi 0, %s148
      %s149 = sphi 0, %s146
      %s150 = sphi 0, %s149
      %s166 = sphi 0, %s150
      %s172 = sphi 0, %s174
      %s175 = sphi 0, %s172
      %s176 = sphi 0, %s175
      %s192 = sphi 0, %s176
      %s200 = sphi 0, %s202
      %s203 = sphi 0, %s200
      %s204 = sphi 0, %s203
      %s220 = sphi 0, %s204
      %s228 = sphi 0, %s230
      %s231 = sphi 0, %s228
      %s232 = sphi 0, %s231
      %s248 = sphi 0, %s232
    $region4: #{tpu_custom_call.1} parent=1 // loop_header_branch
      %23 = sbr.rel (%p21) target = $region8
    $region5: #{tpu_custom_call.1} parent=1 // loop_body
      %s25 = ssub.s32 %s20, 1
      %s26 = ssub.s32 %s20, 2
      %s33 = sadd.s32 1, %s28
      %p34 = scmp.ge.s32.totalorder %s33, 4
      %s35 = scalar_select %p34, 0, %s33
      %s36 = sadd.s32 1, %s27
      %s37 = scalar_select %p34, %s36, %s27
      %p38 = scmp.ge.s32.totalorder %s37, 2
      %s39 = scalar_select %p38, 0, %s37
      %s40 = ssub.s32 %s27, %s39
      %p41 = scmp.eq.s32.totalorder %s40, 0
      %s43 = sadd.s32 %s42, 1
      %s44 = scalar_select %p41, %s42, %s43
      %p47 = pneg %p41
      %p48 = scmp.eq.s32.totalorder %s20, 7
      %p49 = por %p47, %p48
      %p50 = scmp.ne.s32.totalorder %s42, %s45
      %p51 = scmp.eq.s32.totalorder %s20, 0
      %p52 = por %p50, %p51
      %p53 = scmp.ne.s32.totalorder %s42, %s45
      %p54 = scmp.eq.s32.totalorder %s25, 7
      %p55 = por %p53, %p54
      %p56 = scmp.ne.s32.totalorder %s45, %s46
      %p57 = scmp.eq.s32.totalorder %s25, 0
      %p58 = por %p56, %p57
      %p59 = scmp.ne.s32.totalorder %s45, %s46
      %p60 = scmp.eq.s32.totalorder %s26, 7
      %p61 = por %p59, %p60
      %p63 = scmp.ne.s32.totalorder %s46, %s62
      %p64 = scmp.eq.s32.totalorder %s26, 0
      %p65 = por %p63, %p64
      %s66 = ssub.s32 %s27, %s39
      %p67 = scmp.eq.s32.totalorder %s66, 0
      %s69 = sadd.s32 %s68, 1
      %s70 = scalar_select %p67, %s68, %s69
      %p73 = pneg %p67
      %p74 = scmp.eq.s32.totalorder %s20, 7
      %p75 = por %p73, %p74
      %p76 = scmp.ne.s32.totalorder %s68, %s71
      %p77 = scmp.eq.s32.totalorder %s20, 0
      %p78 = por %p76, %p77
      %p79 = scmp.ne.s32.totalorder %s68, %s71
      %p80 = scmp.eq.s32.totalorder %s25, 7
      %p81 = por %p79, %p80
      %p82 = scmp.ne.s32.totalorder %s71, %s72
      %p83 = scmp.eq.s32.totalorder %s25, 0
      %p84 = por %p82, %p83
      %p85 = scmp.ne.s32.totalorder %s71, %s72
      %p86 = scmp.eq.s32.totalorder %s26, 7
      %p87 = por %p85, %p86
      %p89 = scmp.ne.s32.totalorder %s72, %s88
      %p90 = scmp.eq.s32.totalorder %s26, 0
      %p91 = por %p89, %p90
      %s92 = ssub.s32 %s28, %s35
      %p93 = scmp.eq.s32.totalorder %s92, 0
      %s95 = sadd.s32 %s94, 1
      %s96 = scalar_select %p93, %s94, %s95
      %p99 = pneg %p93
      %p100 = scmp.eq.s32.totalorder %s20, 7
      %p101 = por %p99, %p100
      %p102 = scmp.ne.s32.totalorder %s94, %s97
      %p103 = scmp.eq.s32.totalorder %s20, 0
      %p104 = por %p102, %p103
      %p105 = scmp.ne.s32.totalorder %s94, %s97
      %p106 = scmp.eq.s32.totalorder %s25, 7
      %p107 = por %p105, %p106
      %p108 = scmp.ne.s32.totalorder %s97, %s98
      %p109 = scmp.eq.s32.totalorder %s25, 0
      %p110 = por %p108, %p109
      %p111 = scmp.ne.s32.totalorder %s97, %s98
      %p112 = scmp.eq.s32.totalorder %s26, 7
      %p113 = por %p111, %p112
      %p115 = scmp.ne.s32.totalorder %s98, %s114
      %p116 = scmp.eq.s32.totalorder %s26, 0
      %p117 = por %p115, %p116
      %s118 = ssub.s32 %s28, %s35
      %p119 = scmp.eq.s32.totalorder %s118, 0
      %s121 = sadd.s32 %s120, 1
      %s122 = scalar_select %p119, %s120, %s121
      %p125 = pneg %p119
      %p126 = scmp.eq.s32.totalorder %s20, 7
      %p127 = por %p125, %p126
      %p128 = scmp.ne.s32.totalorder %s120, %s123
      %p129 = scmp.eq.s32.totalorder %s20, 0
      %p130 = por %p128, %p129
      %p131 = scmp.ne.s32.totalorder %s120, %s123
      %p132 = scmp.eq.s32.totalorder %s25, 7
      %p133 = por %p131, %p132
      %p134 = scmp.ne.s32.totalorder %s123, %s124
      %p135 = scmp.eq.s32.totalorder %s25, 0
      %p136 = por %p134, %p135
      %p137 = scmp.ne.s32.totalorder %s123, %s124
      %p138 = scmp.eq.s32.totalorder %s26, 7
      %p139 = por %p137, %p138
      %p141 = scmp.ne.s32.totalorder %s124, %s140
      %p142 = scmp.eq.s32.totalorder %s26, 0
      %p143 = por %p141, %p142
      %s144 = ssub.s32 %s28, %s35
      %p145 = scmp.eq.s32.totalorder %s144, 0
      %s147 = sadd.s32 %s146, 1
      %s148 = scalar_select %p145, %s146, %s147
      %p151 = pneg %p145
      %p152 = scmp.eq.s32.totalorder %s20, 7
      %p153 = por %p151, %p152
      %p154 = scmp.ne.s32.totalorder %s146, %s149
      %p155 = scmp.eq.s32.totalorder %s20, 0
      %p156 = por %p154, %p155
      %p157 = scmp.ne.s32.totalorder %s146, %s149
      %p158 = scmp.eq.s32.totalorder %s25, 7
      %p159 = por %p157, %p158
      %p160 = scmp.ne.s32.totalorder %s149, %s150
      %p161 = scmp.eq.s32.totalorder %s25, 0
      %p162 = por %p160, %p161
      %p163 = scmp.ne.s32.totalorder %s149, %s150
      %p164 = scmp.eq.s32.totalorder %s26, 7
      %p165 = por %p163, %p164
      %p167 = scmp.ne.s32.totalorder %s150, %s166
      %p168 = scmp.eq.s32.totalorder %s26, 0
      %p169 = por %p167, %p168
      %s170 = ssub.s32 %s28, %s35
      %p171 = scmp.eq.s32.totalorder %s170, 0
      %s173 = sadd.s32 %s172, 1
      %s174 = scalar_select %p171, %s172, %s173
      %p177 = pneg %p171
      %p178 = scmp.eq.s32.totalorder %s20, 7
      %p179 = por %p177, %p178
      %p180 = scmp.ne.s32.totalorder %s172, %s175
      %p181 = scmp.eq.s32.totalorder %s20, 0
      %p182 = por %p180, %p181
      %p183 = scmp.ne.s32.totalorder %s172, %s175
      %p184 = scmp.eq.s32.totalorder %s25, 7
      %p185 = por %p183, %p184
      %p186 = scmp.ne.s32.totalorder %s175, %s176
      %p187 = scmp.eq.s32.totalorder %s25, 0
      %p188 = por %p186, %p187
      %p189 = scmp.ne.s32.totalorder %s175, %s176
      %p190 = scmp.eq.s32.totalorder %s26, 7
      %p191 = por %p189, %p190
      %p193 = scmp.ne.s32.totalorder %s176, %s192
      %p194 = scmp.eq.s32.totalorder %s26, 0
      %p195 = por %p193, %p194
      %s196 = ssub.s32 %s27, %s39
      %s197 = ssub.s32 %s28, %s35
      %s198 = sor.u32 %s196, %s197
      %p199 = scmp.eq.s32.totalorder %s198, 0
      %s201 = sadd.s32 %s200, 1
      %s202 = scalar_select %p199, %s200, %s201
      %p205 = pneg %p199
      %p206 = scmp.eq.s32.totalorder %s20, 7
      %p207 = por %p205, %p206
      %p208 = scmp.ne.s32.totalorder %s200, %s203
      %p209 = scmp.eq.s32.totalorder %s20, 0
      %p210 = por %p208, %p209
      %p211 = scmp.ne.s32.totalorder %s200, %s203
      %p212 = scmp.eq.s32.totalorder %s25, 7
      %p213 = por %p211, %p212
      %p214 = scmp.ne.s32.totalorder %s203, %s204
      %p215 = scmp.eq.s32.totalorder %s25, 0
      %p216 = por %p214, %p215
      %p217 = scmp.ne.s32.totalorder %s203, %s204
      %p218 = scmp.eq.s32.totalorder %s26, 7
      %p219 = por %p217, %p218
      %p221 = scmp.ne.s32.totalorder %s204, %s220
      %p222 = scmp.eq.s32.totalorder %s26, 0
      %p223 = por %p221, %p222
      %s224 = ssub.s32 %s27, %s39
      %s225 = ssub.s32 %s28, %s35
      %s226 = sor.u32 %s224, %s225
      %p227 = scmp.eq.s32.totalorder %s226, 0
      %s229 = sadd.s32 %s228, 1
      %s230 = scalar_select %p227, %s228, %s229
      %p233 = pneg %p227
      %p234 = scmp.eq.s32.totalorder %s20, 7
      %p235 = por %p233, %p234
      %p236 = scmp.ne.s32.totalorder %s228, %s231
      %p237 = scmp.eq.s32.totalorder %s20, 0
      %p238 = por %p236, %p237
      %p239 = scmp.ne.s32.totalorder %s228, %s231
      %p240 = scmp.eq.s32.totalorder %s25, 7
      %p241 = por %p239, %p240
      %p242 = scmp.ne.s32.totalorder %s231, %s232
      %p243 = scmp.eq.s32.totalorder %s25, 0
      %p244 = por %p242, %p243
      %p245 = scmp.ne.s32.totalorder %s231, %s232
      %p246 = scmp.eq.s32.totalorder %s26, 7
      %p247 = por %p245, %p246
      %p249 = scmp.ne.s32.totalorder %s232, %s248
      %p250 = scmp.eq.s32.totalorder %s26, 0
      %p251 = por %p249, %p250
      %p252 = scmp.le.s32.totalorder 1, %s20
      %p253 = scmp.lt.s32.totalorder %s20, 9
      %p254 = pnand %p252, %p253
      %p255 = pneg %p254
      // Predicated region
      $region9: #{tpu_custom_call.1} parent=5 // pred_check
        _
      $region10: #{tpu_custom_call.1} parent=5 // pred_check_branch
        %257 = sbr.rel (%p254) target = $region12
      $region11: #{tpu_custom_call.1} parent=5 // pred_region
        %s258 = ssub.s32 %s20, 1
      $region12: #{tpu_custom_call.1} parent=5 // pred_fallthru
        _
      %p259 = scmp.lt.s32.totalorder %s20, 8
      // Predicated region
      $region13: #{tpu_custom_call.1} parent=5 // pred_check
        %p260 = pneg %p259
      $region14: #{tpu_custom_call.1} parent=5 // pred_check_branch
        %262 = sbr.rel (%p260) target = $region16
      $region15: #{tpu_custom_call.1} parent=5 // pred_region
        // Predicated region
        $region17: #{tpu_custom_call.1} parent=15 // pred_check
          %p263 = pneg %p52
        $region18: #{tpu_custom_call.1} parent=15 // pred_check_branch
          %265 = sbr.rel (%p263) target = $region20
        $region19: #{tpu_custom_call.1} parent=15 // pred_region
          %p266 = scmp.lt.s32.totalorder %s27, 1
          %s267 = scalar_select %p266, %s27, 1
          %s268 = smul.addr %s267, 8
          %s269 = scalar_lea.vmem %s0, %s268
        $region20: #{tpu_custom_call.1} parent=15 // pred_fallthru
          _
        // Predicated region
        $region21: #{tpu_custom_call.1} parent=15 // pred_check
          %p270 = pneg %p78
        $region22: #{tpu_custom_call.1} parent=15 // pred_check_branch
          %272 = sbr.rel (%p270) target = $region24
        $region23: #{tpu_custom_call.1} parent=15 // pred_region
          %p273 = scmp.lt.s32.totalorder %s27, 1
          %s274 = scalar_select %p273, %s27, 1
          %s275 = smul.addr %s274, 8
          %s276 = scalar_lea.vmem %s1, %s275
        $region24: #{tpu_custom_call.1} parent=15 // pred_fallthru
          _
        // Predicated region
        $region25: #{tpu_custom_call.1} parent=15 // pred_check
          %p277 = pneg %p104
        $region26: #{tpu_custom_call.1} parent=15 // pred_check_branch
          %279 = sbr.rel (%p277) target = $region28
        $region27: #{tpu_custom_call.1} parent=15 // pred_region
          %p280 = scmp.lt.s32.totalorder %s28, 3
          %s281 = scalar_select %p280, %s28, 3
          %s282 = smul.addr %s281, 4
          %s283 = smul.addr %s282, 8
          %s284 = scalar_lea.vmem %s2, %s283
        $region28: #{tpu_custom_call.1} parent=15 // pred_fallthru
          _
        // Predicated region
        $region29: #{tpu_custom_call.1} parent=15 // pred_check
          %p285 = pneg %p130
        $region30: #{tpu_custom_call.1} parent=15 // pred_check_branch
          %287 = sbr.rel (%p285) target = $region32
        $region31: #{tpu_custom_call.1} parent=15 // pred_region
          %p288 = scmp.lt.s32.totalorder %s28, 3
          %s289 = scalar_select %p288, %s28, 3
          %s290 = scalar_lea.vmem %s3, %s289
        $region32: #{tpu_custom_call.1} parent=15 // pred_fallthru
          _
        // Predicated region
        $region33: #{tpu_custom_call.1} parent=15 // pred_check
          %p291 = pneg %p156
        $region34: #{tpu_custom_call.1} parent=15 // pred_check_branch
          %293 = sbr.rel (%p291) target = $region36
        $region35: #{tpu_custom_call.1} parent=15 // pred_region
          %p294 = scmp.lt.s32.totalorder %s28, 3
          %s295 = scalar_select %p294, %s28, 3
          %s296 = smul.addr %s295, 4
          %s297 = smul.addr %s296, 8
          %s298 = scalar_lea.vmem %s4, %s297
        $region36: #{tpu_custom_call.1} parent=15 // pred_fallthru
          _
        // Predicated region
        $region37: #{tpu_custom_call.1} parent=15 // pred_check
          %p299 = pneg %p182
        $region38: #{tpu_custom_call.1} parent=15 // pred_check_branch
          %301 = sbr.rel (%p299) target = $region40
        $region39: #{tpu_custom_call.1} parent=15 // pred_region
          %p302 = scmp.lt.s32.totalorder %s28, 3
          %s303 = scalar_select %p302, %s28, 3
          %s304 = scalar_lea.vmem %s5, %s303
        $region40: #{tpu_custom_call.1} parent=15 // pred_fallthru
          _
      $region16: #{tpu_custom_call.1} parent=5 // pred_fallthru
        _
      %p305 = scmp.le.s32.totalorder 1, %s20
      %p306 = scmp.lt.s32.totalorder %s20, 9
      %p307 = pnand %p305, %p306
      %p308 = pneg %p307
      // Predicated region
      $region41: #{tpu_custom_call.1} parent=5 // pred_check
        _
      $region42: #{tpu_custom_call.1} parent=5 // pred_check_branch
        %310 = sbr.rel (%p307) target = $region44
      $region43: #{tpu_custom_call.1} parent=5 // pred_region
        %s311 = ssub.s32 %s20, 1
        %p312 = scmp.lt.s32.totalorder %s29, 1
        %s313 = scalar_select %p312, %s29, 1
        %s314 = smul.addr %s313, 8
        %s315 = scalar_lea.vmem %s0, %s314
        %p316 = pneg %p58
        %p317 = pneg %p55
        %p318 = scmp.lt.s32.totalorder %s29, 1
        %s319 = scalar_select %p318, %s29, 1
        %s320 = smul.addr %s319, 8
        %s321 = scalar_lea.vmem %s1, %s320
        %p322 = pneg %p84
        %p323 = pneg %p81
        %p324 = scmp.lt.s32.totalorder %s30, 3
        %s325 = scalar_select %p324, %s30, 3
        %s326 = smul.addr %s325, 4
        %s327 = smul.addr %s326, 8
        %s328 = scalar_lea.vmem %s2, %s327
        %p329 = pneg %p110
        %p330 = pneg %p107
        %p331 = scmp.lt.s32.totalorder %s30, 3
        %s332 = scalar_select %p331, %s30, 3
        %s333 = scalar_lea.vmem %s3, %s332
        %p334 = pneg %p136
        %p335 = pneg %p133
        %p336 = scmp.lt.s32.totalorder %s30, 3
        %s337 = scalar_select %p336, %s30, 3
        %s338 = smul.addr %s337, 4
        %s339 = smul.addr %s338, 8
        %s340 = scalar_lea.vmem %s4, %s339
        %p341 = pneg %p162
        %p342 = pneg %p159
        %p343 = scmp.lt.s32.totalorder %s30, 3
        %s344 = scalar_select %p343, %s30, 3
        %s345 = scalar_lea.vmem %s5, %s344
        %p346 = pneg %p188
        %p347 = pneg %p185
        %p348 = pneg %p216
        %p349 = pneg %p213
        %s350 = sand.u32 %s203, 1
        %s351 = scalar_lea.sflag [#allocation3], %s350
        %s352 = sand.u32 %s203, 1
        %s353 = smul.addr %s352, 8
        %s354 = scalar_lea.vmem [#allocation2], %s353
        %p355 = pneg %p244
        %p356 = pneg %p241
        %s357 = sand.u32 %s231, 1
        %s358 = scalar_lea.sflag [#allocation5], %s357
        %s359 = sand.u32 %s231, 1
        %s360 = smul.addr %s359, 8
        %s361 = scalar_lea.vmem [#allocation4], %s360
        %p362 = scmp.lt.s32.totalorder %s29, 1
        %s363 = scalar_select %p362, %s29, 1
        %s364 = smul.addr %s363, 8
        %s365 = scalar_lea.vmem %s0, %s364
        %p366 = scmp.lt.s32.totalorder %s29, 1
        %s367 = scalar_select %p366, %s29, 1
        %s368 = smul.addr %s367, 8
        %s369 = scalar_lea.vmem %s1, %s368
        %p370 = scmp.lt.s32.totalorder %s30, 3
        %s371 = scalar_select %p370, %s30, 3
        %s372 = smul.addr %s371, 4
        %s373 = smul.addr %s372, 8
        %s374 = scalar_lea.vmem %s2, %s373
        %p375 = scmp.lt.s32.totalorder %s30, 3
        %s376 = scalar_select %p375, %s30, 3
        %s377 = scalar_lea.vmem %s3, %s376
        %p378 = scmp.lt.s32.totalorder %s30, 3
        %s379 = scalar_select %p378, %s30, 3
        %s380 = smul.addr %s379, 4
        %s381 = smul.addr %s380, 8
        %s382 = scalar_lea.vmem %s4, %s381
        %p383 = scmp.lt.s32.totalorder %s30, 3
        %s384 = scalar_select %p383, %s30, 3
        %s385 = scalar_lea.vmem %s5, %s384
        %v386 = vld [vmem:[%s365] sm:$0xff]
        %v387 = vld [vmem:[%s369] sm:$0xff]
        %v388 = vld [vmem:[%s374] sm:$0xff]
        %v389 = vld [vmem:[%s374 + $0x8] sm:$0xff]
        %v390 = vld [vmem:[%s374 + $0x10] sm:$0xff]
        %v391 = vld [vmem:[%s374 + $0x18] sm:$0xff]
        %v392 = vld [vmem:[%s377] sm:$0x1]
        %v394 = vperm.slane %v392, 0
        %vm396 = vcmask 261120
        %v398 = vsel %vm396, %v386, 0
        %400 = vmatpush.msra.mxu0 0.0
        %401 = vmatpush.msra.mxu0 0.0
        %402 = vmatpush.msra.mxu0 0.0
        %403 = vmatpush.msra.mxu0 0.0
        %404 = vmatpush.msra.mxu0 0.0
        %405 = vmatpush.msra.mxu0 0.0
        %406 = vmatpush.msra.mxu0 0.0
        %407 = vmatpush.msra.mxu0 0.0
        %408 = vmatpush.msra.mxu0 0.0
        %409 = vmatpush.msra.mxu0 0.0
        %410 = vmatpush.msra.mxu0 0.0
        %411 = vmatpush.msra.mxu0 0.0
        %412 = vmatpush.msra.mxu0 %v391
        %413 = vmatpush.msra.mxu0 %v390
        %414 = vmatpush.msra.mxu0 %v389
        %415 = vmatpush.msra.mxu0 %v388
        %416 = vmatmul.f32.gmra.mxu0 %v398
        %v417 = vpop.f32.mrf.mxu0
        %v418 = vadd.f32 %v394, %v417
        %419 = vdwg.mxu0
        %v420 = vld [vmem:[%s382] sm:$0xff]
        %v421 = vld [vmem:[%s382 + $0x8] sm:$0xff]
        %v422 = vld [vmem:[%s382 + $0x10] sm:$0xff]
        %v423 = vld [vmem:[%s382 + $0x18] sm:$0xff]
        %v424 = vld [vmem:[%s385] sm:$0x1]
        %v426 = vperm.slane %v424, 0
        %v429 = vsel %vm396, %v387, 0
        %431 = vmatpush.msra.mxu0 0.0
        %432 = vmatpush.msra.mxu0 0.0
        %433 = vmatpush.msra.mxu0 0.0
        %434 = vmatpush.msra.mxu0 0.0
        %435 = vmatpush.msra.mxu0 0.0
        %436 = vmatpush.msra.mxu0 0.0
        %437 = vmatpush.msra.mxu0 0.0
        %438 = vmatpush.msra.mxu0 0.0
        %439 = vmatpush.msra.mxu0 0.0
        %440 = vmatpush.msra.mxu0 0.0
        %441 = vmatpush.msra.mxu0 0.0
        %442 = vmatpush.msra.mxu0 0.0
        %443 = vmatpush.msra.mxu0 %v423
        %444 = vmatpush.msra.mxu0 %v422
        %445 = vmatpush.msra.mxu0 %v421
        %446 = vmatpush.msra.mxu0 %v420
        %447 = vmatmul.f32.gmra.mxu0 %v429
        %v448 = vpop.f32.mrf.mxu0
        %v449 = vadd.f32 %v426, %v448
        %450 = vdwg.mxu0
        %vm451 = vcmask 64512
        %452 = vst.msk [vmem:[%s354] sm:$0xff] %vm451, %v418
        %453 = vst.msk [vmem:[%s361] sm:$0xff] %vm451, %v449
        %s454 = sand.u32 %s203, 1
        %s455 = scalar_lea.sflag [#allocation3], %s454
        %s456 = sand.u32 %s203, 1
        %s457 = smul.addr %s456, 8
        %s458 = scalar_lea.vmem [#allocation2], %s457
        %s459 = sand.u32 %s231, 1
        %s460 = scalar_lea.sflag [#allocation5], %s459
        %s461 = sand.u32 %s231, 1
        %s462 = smul.addr %s461, 8
        %s463 = scalar_lea.vmem [#allocation4], %s462
        // Predicated region
        $region45: #{tpu_custom_call.1} parent=43 // pred_check
          %p464 = pneg %p213
        $region46: #{tpu_custom_call.1} parent=43 // pred_check_branch
          %466 = sbr.rel (%p464) target = $region48
        $region47: #{tpu_custom_call.1} parent=43 // pred_region
          %468 = vsyncadd %s455, 0
          %s469 = smul.addr %s29, 4
          %s470 = sadd.s32 %s30, %s469
          %s471 = smul.addr %s470, 8
          %s472 = scalar_lea.hbm %s6, %s471
          %s474 = sshll.u32 %s458, 4
          %s475 = int_to_ptr.vmem [resolvable:$true] %s474
          %s476 = sshll.u32 %s472, 4
          %s477 = int_to_ptr.hbm [resolvable:$true] %s476
          %479 = dma.vmem_to_hbm [thread:$0]  %s475, 128, %s477, %s455
        $region48: #{tpu_custom_call.1} parent=43 // pred_fallthru
          _
        // Predicated region
        $region49: #{tpu_custom_call.1} parent=43 // pred_check
          %p480 = pneg %p241
        $region50: #{tpu_custom_call.1} parent=43 // pred_check_branch
          %482 = sbr.rel (%p480) target = $region52
        $region51: #{tpu_custom_call.1} parent=43 // pred_region
          %484 = vsyncadd %s460, 0
          %s485 = smul.addr %s29, 4
          %s486 = sadd.s32 %s30, %s485
          %s487 = smul.addr %s486, 8
          %s488 = scalar_lea.hbm %s7, %s487
          %s490 = sshll.u32 %s463, 4
          %s491 = int_to_ptr.vmem [resolvable:$true] %s490
          %s492 = sshll.u32 %s488, 4
          %s493 = int_to_ptr.hbm [resolvable:$true] %s492
          %495 = dma.vmem_to_hbm [thread:$0]  %s491, 128, %s493, %s460
        $region52: #{tpu_custom_call.1} parent=43 // pred_fallthru
          _
      $region44: #{tpu_custom_call.1} parent=5 // pred_fallthru
        _
      %p496 = scmp.le.s32.totalorder 2, %s20
      // Predicated region
      $region53: #{tpu_custom_call.1} parent=5 // pred_check
        %p497 = pneg %p496
      $region54: #{tpu_custom_call.1} parent=5 // pred_check_branch
        %499 = sbr.rel (%p497) target = $region56
      $region55: #{tpu_custom_call.1} parent=5 // pred_region
        %s500 = ssub.s32 %s20, 2
        // Predicated region
        $region57: #{tpu_custom_call.1} parent=55 // pred_check
          %p501 = pneg %p219
        $region58: #{tpu_custom_call.1} parent=55 // pred_check_branch
          %503 = sbr.rel (%p501) target = $region60
        $region59: #{tpu_custom_call.1} parent=55 // pred_region
          %s504 = sand.u32 %s204, 1
          %s505 = scalar_lea.sflag [#allocation3], %s504
          %s506 = sand.u32 %s204, 1
          %s507 = smul.addr %s506, 8
          %s508 = scalar_lea.vmem [#allocation2], %s507
          %510 = dma.done %s505, 128
        $region60: #{tpu_custom_call.1} parent=55 // pred_fallthru
          _
        // Predicated region
        $region61: #{tpu_custom_call.1} parent=55 // pred_check
          %p511 = pneg %p247
        $region62: #{tpu_custom_call.1} parent=55 // pred_check_branch
          %513 = sbr.rel (%p511) target = $region64
        $region63: #{tpu_custom_call.1} parent=55 // pred_region
          %s514 = sand.u32 %s232, 1
          %s515 = scalar_lea.sflag [#allocation5], %s514
          %s516 = sand.u32 %s232, 1
          %s517 = smul.addr %s516, 8
          %s518 = scalar_lea.vmem [#allocation4], %s517
          %520 = dma.done %s515, 128
        $region64: #{tpu_custom_call.1} parent=55 // pred_fallthru
          _
      $region56: #{tpu_custom_call.1} parent=5 // pred_fallthru
        _
    $region6: #{tpu_custom_call.1} parent=1 // loop_footer
      %s24 = sadd.s32 1, %s20
    $region7: #{tpu_custom_call.1} parent=1 // loop_footer_branch
      %19 = sbr.rel target = $region3
    $region8: #{tpu_custom_call.1} parent=1 // loop_exit
      _
    %521 = vsyncpa [#allocation3], 1
    %s522 = scalar_lea.sflag [#allocation3], 1
    %523 = vsyncpa %s522, 1
    %524 = vsyncpa [#allocation5], 1
    %s525 = scalar_lea.sflag [#allocation5], 1
    %526 = vsyncpa %s525, 1

</llo_original>
